<compile_context>
chip_gen: v7x
topology: tpu7x:2x2x1
jax: 0.10.0
libtpu: 0.0.40
codegen_flags: <defaults>
</compile_context>

<pallas_src>
import functools

import jax
import jax.numpy as jnp
from jax.experimental import pallas as pl
from jax.experimental.pallas import tpu as pltpu

LANE = 128      # TPU lane width — pad all feature dims to this
SUBLANE = 8     # f32 sublane tile
MAX_BATCH_TILE = 256   # rows per grid step (multiple of SUBLANE)


def _ceil_to(x, m):
    return ((x + m - 1) // m) * m


def _pad2d(x, rows, cols):
    r, c = x.shape
    return jnp.pad(x, ((0, rows - r), (0, cols - c)))


# -----------------------------------------------------------------------------
# Kernel: one batch tile per grid step, full 5-layer MLP per tile
# -----------------------------------------------------------------------------
def autoencoder_kernel(obs_ref, act_ref, w_ref, b_ref, out_ref, *, use_bf16_mxu):
    """obs_ref : (TB, LANE)        f32   zero-padded observation tile
       act_ref : (TB, LANE)        f32   zero-padded action tile
       w_ref   : (6, LANE, LANE)   f32   [enc_w1, enc_w2, dec_w1s, dec_w1a, dec_w2, dec_w3]
       b_ref   : (8, LANE)         f32   rows 0..4 = [enc_b1, enc_b2, dec_b1, dec_b2, dec_b3]
       out_ref : (TB, LANE)        f32
    """
    obs = obs_ref[...]
    act = act_ref[...]
    biases = b_ref[...]                       # (8, LANE), loaded once per tile

    def mx(x):
        # Feed the MXU bf16 where it is native (v6e/v7x); accumulation stays
        # f32 via preferred_element_type; bias-add / ReLU stay f32 on the VPU.
        return x.astype(jnp.bfloat16) if use_bf16_mxu else x

    def dense(x, k):
        return jnp.dot(mx(x), mx(w_ref[k]), preferred_element_type=jnp.float32)

    def bias(k):
        return biases[k:k + 1, :]             # (1, LANE), static slice, broadcasts

    # ---- Encoder ----
    h = jnp.maximum(dense(obs, 0) + bias(0), 0.0)
    state = jnp.maximum(dense(h, 1) + bias(1), 0.0)

    # ---- Decoder ----  cat(state, action) @ W1 == state @ W1s + action @ W1a
    x = jnp.maximum(dense(state, 2) + dense(act, 3) + bias(2), 0.0)
    x = jnp.maximum(dense(x, 4) + bias(3), 0.0)
    pred = dense(x, 5) + bias(4)              # final layer: no activation

    out_ref[...] = pred.astype(out_ref.dtype)


# -----------------------------------------------------------------------------
# Parameter packing (done once, outside the per-step call)
# -----------------------------------------------------------------------------
def pack_params(params):
    """Pack 11 arrays into 2 lane-padded blobs (zero padding keeps math exact)."""
    w_names = ["enc_w1", "enc_w2", "dec_w1s", "dec_w1a", "dec_w2", "dec_w3"]
    b_names = ["enc_b1", "enc_b2", "dec_b1", "dec_b2", "dec_b3"]

    for n in w_names:
        assert max(params[n].shape) <= LANE, (
            "pack_params assumes all feature dims <= 128; tile weights otherwise")

    w = jnp.stack([_pad2d(params[n].astype(jnp.float32), LANE, LANE)
                   for n in w_names])                                   # (6,128,128)
    b = jnp.stack([_pad2d(params[n].astype(jnp.float32), 1, LANE)[0]
                   for n in b_names])                                   # (5,128)
    b = jnp.pad(b, ((0, SUBLANE - b.shape[0]), (0, 0)))                 # (8,128)

    return {
        "w": w,
        "b": b,
        "output_dim": params["dec_w3"].shape[1],
    }


# -----------------------------------------------------------------------------
# Wrapper
# -----------------------------------------------------------------------------
def autoencoder_forward(observation, action, packed, *, use_bf16_mxu=False):
    """observation: (B, input_dim), action: (B, action_dim) -> (B, output_dim)."""
    B = observation.shape[0]

    # Choose a batch tile: whole (padded) batch if small, else MAX_BATCH_TILE.
    Bp = _ceil_to(max(B, SUBLANE), SUBLANE)
    tb = min(Bp, MAX_BATCH_TILE)
    Bp = _ceil_to(Bp, tb)                     # grid divides evenly
    n_tiles = Bp // tb

    obs_p = _pad2d(observation.astype(jnp.float32), Bp, LANE)
    act_p = _pad2d(action.astype(jnp.float32), Bp, LANE)
    w, b = packed["w"], packed["b"]

    n_layers = w.shape[0]
    flops = 2 * Bp * LANE * LANE * n_layers
    bytes_accessed = 4 * (obs_p.size + act_p.size + w.size + b.size + Bp * LANE)

    kernel = functools.partial(autoencoder_kernel, use_bf16_mxu=use_bf16_mxu)

    grid_spec = pltpu.PrefetchScalarGridSpec(
        num_scalar_prefetch=0,
        grid=(n_tiles,),
        in_specs=[
            pl.BlockSpec((tb, LANE), lambda i: (i, 0)),        # obs tile
            pl.BlockSpec((tb, LANE), lambda i: (i, 0)),        # act tile
            pl.BlockSpec((6, LANE, LANE), lambda i: (0, 0, 0)),  # weights (resident)
            pl.BlockSpec((SUBLANE, LANE), lambda i: (0, 0)),     # biases  (resident)
        ],
        out_specs=pl.BlockSpec((tb, LANE), lambda i: (i, 0)),
    )

    out_p = pl.pallas_call(
        kernel,
        out_shape=jax.ShapeDtypeStruct((Bp, LANE), jnp.float32),
        grid_spec=grid_spec,
        cost_estimate=pl.CostEstimate(
            flops=flops, transcendentals=0, bytes_accessed=bytes_accessed),
        compiler_params=pltpu.CompilerParams(
            dimension_semantics=("parallel",),
            # Params + double-buffered batch tiles fit comfortably; explicit
            # limit keeps this portable to v7x's smaller physical VMEM.
            vmem_limit_bytes=32 * 1024 * 1024,
        ),
    )(obs_p, act_p, w, b)

    return out_p[:B, :packed["output_dim"]]


# -----------------------------------------------------------------------------
# Init + pure-JAX reference
# -----------------------------------------------------------------------------
def init_params(key, input_dim, hidden_dim, state_dim, action_dim, output_dim):
    """PyTorch-style uniform(+-1/sqrt(fan_in)) init.

    Weights stored transposed: (in_features, out_features). Biases (1, out).
    Decoder fc1 weight is split into state / action blocks (for the cat-split).
    """
    ks = jax.random.split(key, 10)

    def linear(kw, kb, fan_in, fan_out):
        bound = 1.0 / jnp.sqrt(fan_in)
        w = jax.random.uniform(kw, (fan_in, fan_out), jnp.float32, -bound, bound)
        b = jax.random.uniform(kb, (1, fan_out), jnp.float32, -bound, bound)
        return w, b

    enc_w1, enc_b1 = linear(ks[0], ks[1], input_dim, hidden_dim)
    enc_w2, enc_b2 = linear(ks[2], ks[3], hidden_dim, hidden_dim)
    dec_w1, dec_b1 = linear(ks[4], ks[5], state_dim + action_dim, hidden_dim)
    dec_w2, dec_b2 = linear(ks[6], ks[7], hidden_dim, hidden_dim)
    dec_w3, dec_b3 = linear(ks[8], ks[9], hidden_dim, output_dim)

    return {
        "enc_w1": enc_w1, "enc_b1": enc_b1,
        "enc_w2": enc_w2, "enc_b2": enc_b2,
        "dec_w1s": dec_w1[:state_dim, :],   # state half of cat
        "dec_w1a": dec_w1[state_dim:, :],   # action half of cat
        "dec_b1": dec_b1,
        "dec_w2": dec_w2, "dec_b2": dec_b2,
        "dec_w3": dec_w3, "dec_b3": dec_b3,
    }


def reference_forward(observation, action, params):
    """Pure-JAX f32 reference mirroring the PyTorch forward."""
    h = jax.nn.relu(observation @ params["enc_w1"] + params["enc_b1"])
    state = jax.nn.relu(h @ params["enc_w2"] + params["enc_b2"])
    cat_w = jnp.concatenate([params["dec_w1s"], params["dec_w1a"]], axis=0)
    x = jnp.concatenate([state, action], axis=1)
    x = jax.nn.relu(x @ cat_w + params["dec_b1"])
    x = jax.nn.relu(x @ params["dec_w2"] + params["dec_b2"])
    return x @ params["dec_w3"] + params["dec_b3"]


# -----------------------------------------------------------------------------
# Self-test
# -----------------------------------------------------------------------------
if __name__ == "__main__":
    # Small shapes consistent with the module's forward.
    # Note: state_dim must equal hidden_dim for Encoder's output to feed Decoder.
    batch = 8
    input_dim = 16
    hidden_dim = 32
    state_dim = 32
    action_dim = 8
    output_dim = 16

    key = jax.random.PRNGKey(0)
    k_obs, k_act, k_params = jax.random.split(key, 3)

    observation = jax.random.normal(k_obs, (batch, input_dim), jnp.float32)
    action = jax.random.normal(k_act, (batch, action_dim), jnp.float32)
    params = init_params(k_params, input_dim, hidden_dim, state_dim,
                         action_dim, output_dim)
    packed = pack_params(params)   # done once; params stay resident across batch tiles

    ref = reference_forward(observation, action, params)

    # Exact f32 path (matches PyTorch fp32 semantics).
    out = autoencoder_forward(observation, action, packed, use_bf16_mxu=False)
    out = jax.block_until_ready(out)
    assert out.shape == (batch, output_dim)
    assert jnp.allclose(out, ref, atol=1e-5, rtol=1e-5), "f32 mismatch vs reference"

    # bf16-MXU path (v6e/v7x-friendly); looser tolerance due to bf16 inputs.
    out_bf16 = autoencoder_forward(observation, action, packed, use_bf16_mxu=True)
    out_bf16 = jax.block_until_ready(out_bf16)
    assert jnp.allclose(out_bf16, ref, atol=5e-2, rtol=5e-2), "bf16 mismatch vs reference"

    # Multi-tile batch path exercises the grid (n_tiles > 1).
    big_batch = 600
    kb_obs, kb_act = jax.random.split(jax.random.PRNGKey(1))
    obs_big = jax.random.normal(kb_obs, (big_batch, input_dim), jnp.float32)
    act_big = jax.random.normal(kb_act, (big_batch, action_dim), jnp.float32)
    out_big = autoencoder_forward(obs_big, act_big, packed)
    out_big = jax.block_until_ready(out_big)
    ref_big = reference_forward(obs_big, act_big, params)
    assert out_big.shape == (big_batch, output_dim)
    assert jnp.allclose(out_big, ref_big, atol=1e-5, rtol=1e-5), "grid mismatch vs reference"

    print("KERNEL_OK")
</pallas_src>

<mosaic_0001>
module attributes {stable_mosaic.version = 11 : i64} {
  func.func @autoencoder_kernel(%arg0: i32, %arg1: memref<8x128xf32, #tpu.memory_space<vmem>>, %arg2: memref<8x128xf32, #tpu.memory_space<vmem>>, %arg3: memref<6x128x128xf32, #tpu.memory_space<vmem>>, %arg4: memref<8x128xf32, #tpu.memory_space<vmem>>, %arg5: memref<8x128xf32, #tpu.memory_space<vmem>>) attributes {dimension_semantics = [#tpu.dimension_semantics<parallel>], iteration_bounds = array<i64: 1>, scalar_prefetch = 0 : i64, scratch_operands = 0 : i64, tpu.core_type = #tpu.core_type<tc>, window_params = [{transform_indices = @transform_0, window_bounds = array<i64: 8, 128>}, {transform_indices = @transform_1, window_bounds = array<i64: 8, 128>}, {pipeline_mode = #tpu.pipeline_mode<synchronous>, transform_indices = @transform_2, window_bounds = array<i64: 6, 128, 128>}, {pipeline_mode = #tpu.pipeline_mode<synchronous>, transform_indices = @transform_3, window_bounds = array<i64: 8, 128>}, {transform_indices = @transform_4, window_bounds = array<i64: 8, 128>}]} {
    %c0 = arith.constant 0 : index
    %c0_0 = arith.constant 0 : index
    %0 = vector.load %arg1[%c0, %c0_0] : memref<8x128xf32, #tpu.memory_space<vmem>>, vector<8x128xf32>
    %c0_1 = arith.constant 0 : index
    %c0_2 = arith.constant 0 : index
    %1 = vector.load %arg2[%c0_1, %c0_2] : memref<8x128xf32, #tpu.memory_space<vmem>>, vector<8x128xf32>
    %c0_3 = arith.constant 0 : index
    %c0_4 = arith.constant 0 : index
    %2 = vector.load %arg4[%c0_3, %c0_4] : memref<8x128xf32, #tpu.memory_space<vmem>>, vector<8x128xf32>
    %c0_5 = arith.constant 0 : index
    %c0_6 = arith.constant 0 : index
    %c0_7 = arith.constant 0 : index
    %3 = vector.load %arg3[%c0_5, %c0_6, %c0_7] : memref<6x128x128xf32, #tpu.memory_space<vmem>>, vector<1x128x128xf32>
    %4 = vector.shape_cast %3 : vector<1x128x128xf32> to vector<128x128xf32>
    %cst = arith.constant dense<0.000000e+00> : vector<8x128xf32>
    %5 = tpu.matmul %0, %4, %cst {dimension_numbers = #tpu.dot_dimension_numbers<[1], [0], [0], [1], [0, 0, 1, 1], [], []>} : vector<8x128xf32>, vector<128x128xf32>, vector<8x128xf32> -> vector<8x128xf32>
    %6 = vector.extract_strided_slice %2 {offsets = [0, 0], sizes = [1, 128], strides = [1, 1]} : vector<8x128xf32> to vector<1x128xf32>
    %7 = vector.broadcast %6 : vector<1x128xf32> to vector<8x128xf32>
    %8 = arith.addf %5, %7 : vector<8x128xf32>
    %cst_8 = arith.constant 0.000000e+00 : f32
    %9 = vector.broadcast %cst_8 : f32 to vector<8x128xf32>
    %10 = arith.maximumf %8, %9 : vector<8x128xf32>
    %c1 = arith.constant 1 : index
    %c0_9 = arith.constant 0 : index
    %c0_10 = arith.constant 0 : index
    %11 = vector.load %arg3[%c1, %c0_9, %c0_10] : memref<6x128x128xf32, #tpu.memory_space<vmem>>, vector<1x128x128xf32>
    %12 = vector.shape_cast %11 : vector<1x128x128xf32> to vector<128x128xf32>
    %cst_11 = arith.constant dense<0.000000e+00> : vector<8x128xf32>
    %13 = tpu.matmul %10, %12, %cst_11 {dimension_numbers = #tpu.dot_dimension_numbers<[1], [0], [0], [1], [0, 0, 1, 1], [], []>} : vector<8x128xf32>, vector<128x128xf32>, vector<8x128xf32> -> vector<8x128xf32>
    %14 = vector.extract_strided_slice %2 {offsets = [1, 0], sizes = [1, 128], strides = [1, 1]} : vector<8x128xf32> to vector<1x128xf32>
    %15 = vector.broadcast %14 : vector<1x128xf32> to vector<8x128xf32>
    %16 = arith.addf %13, %15 : vector<8x128xf32>
    %cst_12 = arith.constant 0.000000e+00 : f32
    %17 = vector.broadcast %cst_12 : f32 to vector<8x128xf32>
    %18 = arith.maximumf %16, %17 : vector<8x128xf32>
    %c2 = arith.constant 2 : index
    %c0_13 = arith.constant 0 : index
    %c0_14 = arith.constant 0 : index
    %19 = vector.load %arg3[%c2, %c0_13, %c0_14] : memref<6x128x128xf32, #tpu.memory_space<vmem>>, vector<1x128x128xf32>
    %20 = vector.shape_cast %19 : vector<1x128x128xf32> to vector<128x128xf32>
    %cst_15 = arith.constant dense<0.000000e+00> : vector<8x128xf32>
    %21 = tpu.matmul %18, %20, %cst_15 {dimension_numbers = #tpu.dot_dimension_numbers<[1], [0], [0], [1], [0, 0, 1, 1], [], []>} : vector<8x128xf32>, vector<128x128xf32>, vector<8x128xf32> -> vector<8x128xf32>
    %c3 = arith.constant 3 : index
    %c0_16 = arith.constant 0 : index
    %c0_17 = arith.constant 0 : index
    %22 = vector.load %arg3[%c3, %c0_16, %c0_17] : memref<6x128x128xf32, #tpu.memory_space<vmem>>, vector<1x128x128xf32>
    %23 = vector.shape_cast %22 : vector<1x128x128xf32> to vector<128x128xf32>
    %cst_18 = arith.constant dense<0.000000e+00> : vector<8x128xf32>
    %24 = tpu.matmul %1, %23, %cst_18 {dimension_numbers = #tpu.dot_dimension_numbers<[1], [0], [0], [1], [0, 0, 1, 1], [], []>} : vector<8x128xf32>, vector<128x128xf32>, vector<8x128xf32> -> vector<8x128xf32>
    %25 = arith.addf %21, %24 : vector<8x128xf32>
    %26 = vector.extract_strided_slice %2 {offsets = [2, 0], sizes = [1, 128], strides = [1, 1]} : vector<8x128xf32> to vector<1x128xf32>
    %27 = vector.broadcast %26 : vector<1x128xf32> to vector<8x128xf32>
    %28 = arith.addf %25, %27 : vector<8x128xf32>
    %cst_19 = arith.constant 0.000000e+00 : f32
    %29 = vector.broadcast %cst_19 : f32 to vector<8x128xf32>
    %30 = arith.maximumf %28, %29 : vector<8x128xf32>
    %c4 = arith.constant 4 : index
    %c0_20 = arith.constant 0 : index
    %c0_21 = arith.constant 0 : index
    %31 = vector.load %arg3[%c4, %c0_20, %c0_21] : memref<6x128x128xf32, #tpu.memory_space<vmem>>, vector<1x128x128xf32>
    %32 = vector.shape_cast %31 : vector<1x128x128xf32> to vector<128x128xf32>
    %cst_22 = arith.constant dense<0.000000e+00> : vector<8x128xf32>
    %33 = tpu.matmul %30, %32, %cst_22 {dimension_numbers = #tpu.dot_dimension_numbers<[1], [0], [0], [1], [0, 0, 1, 1], [], []>} : vector<8x128xf32>, vector<128x128xf32>, vector<8x128xf32> -> vector<8x128xf32>
    %34 = vector.extract_strided_slice %2 {offsets = [3, 0], sizes = [1, 128], strides = [1, 1]} : vector<8x128xf32> to vector<1x128xf32>
    %35 = vector.broadcast %34 : vector<1x128xf32> to vector<8x128xf32>
    %36 = arith.addf %33, %35 : vector<8x128xf32>
    %cst_23 = arith.constant 0.000000e+00 : f32
    %37 = vector.broadcast %cst_23 : f32 to vector<8x128xf32>
    %38 = arith.maximumf %36, %37 : vector<8x128xf32>
    %c5 = arith.constant 5 : index
    %c0_24 = arith.constant 0 : index
    %c0_25 = arith.constant 0 : index
    %39 = vector.load %arg3[%c5, %c0_24, %c0_25] : memref<6x128x128xf32, #tpu.memory_space<vmem>>, vector<1x128x128xf32>
    %40 = vector.shape_cast %39 : vector<1x128x128xf32> to vector<128x128xf32>
    %cst_26 = arith.constant dense<0.000000e+00> : vector<8x128xf32>
    %41 = tpu.matmul %38, %40, %cst_26 {dimension_numbers = #tpu.dot_dimension_numbers<[1], [0], [0], [1], [0, 0, 1, 1], [], []>} : vector<8x128xf32>, vector<128x128xf32>, vector<8x128xf32> -> vector<8x128xf32>
    %42 = vector.extract_strided_slice %2 {offsets = [4, 0], sizes = [1, 128], strides = [1, 1]} : vector<8x128xf32> to vector<1x128xf32>
    %43 = vector.broadcast %42 : vector<1x128xf32> to vector<8x128xf32>
    %44 = arith.addf %41, %43 : vector<8x128xf32>
    %c0_27 = arith.constant 0 : index
    %c0_28 = arith.constant 0 : index
    %45 = vector.load %arg5[%c0_27, %c0_28] : memref<8x128xf32, #tpu.memory_space<vmem>>, vector<8x128xf32>
    tpu.vector_store %arg5[%c0_27, %c0_28], %44 {strides = array<i32>} : memref<8x128xf32, #tpu.memory_space<vmem>>, vector<8x128xf32>,
    return
  }
  func.func @transform_0(%arg0: i32) -> (i32, i32) {
    %c0_i32 = arith.constant 0 : i32
    %c0_i32_0 = arith.constant 0 : i32
    return %arg0, %c0_i32 : i32, i32
  }
  func.func @transform_1(%arg0: i32) -> (i32, i32) {
    %c0_i32 = arith.constant 0 : i32
    %c0_i32_0 = arith.constant 0 : i32
    return %arg0, %c0_i32 : i32, i32
  }
  func.func @transform_2(%arg0: i32) -> (i32, i32, i32) {
    %c0_i32 = arith.constant 0 : i32
    %c0_i32_0 = arith.constant 0 : i32
    %c0_i32_1 = arith.constant 0 : i32
    %c0_i32_2 = arith.constant 0 : i32
    return %c0_i32, %c0_i32_0, %c0_i32_1 : i32, i32, i32
  }
  func.func @transform_3(%arg0: i32) -> (i32, i32) {
    %c0_i32 = arith.constant 0 : i32
    %c0_i32_0 = arith.constant 0 : i32
    %c0_i32_1 = arith.constant 0 : i32
    return %c0_i32, %c0_i32_0 : i32, i32
  }
  func.func @transform_4(%arg0: i32) -> (i32, i32) {
    %c0_i32 = arith.constant 0 : i32
    %c0_i32_0 = arith.constant 0 : i32
    return %arg0, %c0_i32 : i32, i32
  }
}

</mosaic_0001>

<llo_original>
// kernel: tpu_custom_call.1
$region0: #{tpu_custom_call.1}
  #allocation0 [shape = 'u32[]', space=smem, size = 0x4, offset = 0x4, fixed_abs, tag = 'smem constant byte address 0x4 - core index']
  #allocation1 [shape = 'u32[144,128]{1,0:T(1,128)}', space=vmem, size = 0x12000, scoped, tag = 'internal scratch']
  %s0 = inlined_call_operand.hbm [shape: f32[8,128], index: 0, kind: input, shape index: {}]
  %s1 = inlined_call_operand.hbm [shape: f32[8,128], index: 1, kind: input, shape index: {}]
  %s2 = inlined_call_operand.hbm [shape: f32[6,128,128], index: 2, kind: input, shape index: {}]
  %s3 = inlined_call_operand.vmem [shape: f32[8,128], index: 3, kind: input, shape index: {}]
  %s4 = inlined_call_operand.hbm [shape: f32[8,128], index: 4, kind: output, shape index: {}]
  %s5 = sld [smem:[#allocation0]]
  $region38: #{tpu_custom_call.1} parent=0
    _
  %s7 = ssub.s32 1, %s5
  %s8 = scalar_select 0, %s7, %s5
  $region1: #{tpu_custom_call.1} parent=0
    #allocation2 [shape = 'u8[4096]{0}', space=vmem, size = 0x1000, scoped, tag = 'input window, operand 0, single buffered']
    #allocation3 [shape = 's32[1]{0}', space=sflag, size = 0x4, scoped, tag = 'scoped memory for tpu_custom_call.1']
    #allocation4 [shape = 's32[1]{0}', space=sflag, size = 0x4, scoped, tag = 'scoped memory for tpu_custom_call.1']
    #allocation5 [shape = 'u8[4096]{0}', space=vmem, size = 0x1000, scoped, tag = 'input window, operand 1, single buffered']
    #allocation6 [shape = 's32[1]{0}', space=sflag, size = 0x4, scoped, tag = 'scoped memory for tpu_custom_call.1']
    #allocation7 [shape = 'u8[393216]{0}', space=vmem, size = 0x60000, scoped, tag = 'input window, operand 2, single buffered']
    #allocation8 [shape = 'u8[4096]{0}', space=vmem, size = 0x1000, scoped, tag = 'output window, operand 0, single buffered']
    %9 = vsyncpa [#allocation3], 0
    %10 = vsyncpa [#allocation6], 0
    %11 = vsyncpa [#allocation4], 0
    // Predicated region
    $region2: #{tpu_custom_call.1} parent=1 // pred_check
      _
    $region3: #{tpu_custom_call.1} parent=1 // pred_check_branch
      %13 = sbr.rel (0) target = $region5
    $region4: #{tpu_custom_call.1} parent=1 // pred_region
      %s15 = ssub.s32 128, 128
      %16 = vsyncadd [#allocation3], %s15
      %s18 = sshll.u32 [#allocation2], 4
      %s19 = int_to_ptr.vmem [resolvable:$true] %s18
      %21 = dma.hbm_to_vmem [thread:$0]  %s0, 128, %s19, [#allocation3]
    $region5: #{tpu_custom_call.1} parent=1 // pred_fallthru
      _
    // Predicated region
    $region6: #{tpu_custom_call.1} parent=1 // pred_check
      _
    $region7: #{tpu_custom_call.1} parent=1 // pred_check_branch
      %23 = sbr.rel (0) target = $region9
    $region8: #{tpu_custom_call.1} parent=1 // pred_region
      %s25 = ssub.s32 128, 128
      %26 = vsyncadd [#allocation6], %s25
      %s28 = sshll.u32 [#allocation5], 4
      %s29 = int_to_ptr.vmem [resolvable:$true] %s28
      %31 = dma.hbm_to_vmem [thread:$0]  %s1, 128, %s29, [#allocation6]
    $region9: #{tpu_custom_call.1} parent=1 // pred_fallthru
      _
    // Predicated region
    $region10: #{tpu_custom_call.1} parent=1 // pred_check
      _
    $region11: #{tpu_custom_call.1} parent=1 // pred_check_branch
      %33 = sbr.rel (0) target = $region13
    $region12: #{tpu_custom_call.1} parent=1 // pred_region
      %s35 = ssub.s32 12288, 12288
      %36 = vsyncadd [#allocation6], %s35
      %s37 = sshll.u32 [#allocation7], 4
      %s38 = int_to_ptr.vmem [resolvable:$true] %s37
      %43 = dma.hbm_to_vmem [thread:$0]  %s2, 12288, %s38, [#allocation6], 128, 128, 8
    $region13: #{tpu_custom_call.1} parent=1 // pred_fallthru
      _
    // Predicated region
    $region14: #{tpu_custom_call.1} parent=1 // pred_check
      _
    $region15: #{tpu_custom_call.1} parent=1 // pred_check_branch
      %45 = sbr.rel (0) target = $region17
    $region16: #{tpu_custom_call.1} parent=1 // pred_region
      _
    $region17: #{tpu_custom_call.1} parent=1 // pred_fallthru
      _
    // Predicated region
    $region18: #{tpu_custom_call.1} parent=1 // pred_check
      _
    $region19: #{tpu_custom_call.1} parent=1 // pred_check_branch
      %47 = sbr.rel (0) target = $region21
    $region20: #{tpu_custom_call.1} parent=1 // pred_region
      %48 = dma.done [#allocation3], 128
    $region21: #{tpu_custom_call.1} parent=1 // pred_fallthru
      _
    // Predicated region
    $region22: #{tpu_custom_call.1} parent=1 // pred_check
      _
    $region23: #{tpu_custom_call.1} parent=1 // pred_check_branch
      %50 = sbr.rel (0) target = $region25
    $region24: #{tpu_custom_call.1} parent=1 // pred_region
      %51 = dma.done [#allocation6], 128
    $region25: #{tpu_custom_call.1} parent=1 // pred_fallthru
      _
    // Predicated region
    $region26: #{tpu_custom_call.1} parent=1 // pred_check
      _
    $region27: #{tpu_custom_call.1} parent=1 // pred_check_branch
      %53 = sbr.rel (0) target = $region29
    $region28: #{tpu_custom_call.1} parent=1 // pred_region
      %54 = dma.done [#allocation6], 12288
    $region29: #{tpu_custom_call.1} parent=1 // pred_fallthru
      _
    %v55 = vld [vmem:[#allocation2] sm:$0xff]
    %v56 = vld [vmem:[#allocation5] sm:$0xff]
    %v57 = vld [vmem:[%s3] sm:$0xff]
    %v58 = vld [vmem:[#allocation7] sm:$0xff]
    %v59 = vld [vmem:[#allocation7 + $0x8] sm:$0xff]
    %v60 = vld [vmem:[#allocation7 + $0x10] sm:$0xff]
    %v61 = vld [vmem:[#allocation7 + $0x18] sm:$0xff]
    %v62 = vld [vmem:[#allocation7 + $0x20] sm:$0xff]
    %v63 = vld [vmem:[#allocation7 + $0x28] sm:$0xff]
    %v64 = vld [vmem:[#allocation7 + $0x30] sm:$0xff]
    %v65 = vld [vmem:[#allocation7 + $0x38] sm:$0xff]
    %v66 = vld [vmem:[#allocation7 + $0x40] sm:$0xff]
    %v67 = vld [vmem:[#allocation7 + $0x48] sm:$0xff]
    %v68 = vld [vmem:[#allocation7 + $0x50] sm:$0xff]
    %v69 = vld [vmem:[#allocation7 + $0x58] sm:$0xff]
    %v70 = vld [vmem:[#allocation7 + $0x60] sm:$0xff]
    %v71 = vld [vmem:[#allocation7 + $0x68] sm:$0xff]
    %v72 = vld [vmem:[#allocation7 + $0x70] sm:$0xff]
    %v73 = vld [vmem:[#allocation7 + $0x78] sm:$0xff]
    %v74 = vlaneseq
    %v75 = vshrl.u32 %v74, 7
    %v76 = vsub.s32 0, %v75
    %v77 = vrot.slane %v57, %v76
    %78 = vmatprep.subr.mxu0 0.0
    %79 = vmatpush1.msra.mxu0 %v58
    %80 = vmatprep.subr.mxu0 0.0
    %81 = vmatpush1.msra.mxu0 %v59
    %82 = vmatprep.subr.mxu0 0.0
    %83 = vmatpush1.msra.mxu0 %v60
    %84 = vmatprep.subr.mxu0 0.0
    %85 = vmatpush1.msra.mxu0 %v61
    %86 = vmatprep.subr.mxu0 0.0
    %87 = vmatpush1.msra.mxu0 %v62
    %88 = vmatprep.subr.mxu0 0.0
    %89 = vmatpush1.msra.mxu0 %v63
    %90 = vmatprep.subr.mxu0 0.0
    %91 = vmatpush1.msra.mxu0 %v64
    %92 = vmatprep.subr.mxu0 0.0
    %93 = vmatpush1.msra.mxu0 %v65
    %94 = vmatprep.subr.mxu0 0.0
    %95 = vmatpush1.msra.mxu0 %v66
    %96 = vmatprep.subr.mxu0 0.0
    %97 = vmatpush1.msra.mxu0 %v67
    %98 = vmatprep.subr.mxu0 0.0
    %99 = vmatpush1.msra.mxu0 %v68
    %100 = vmatprep.subr.mxu0 0.0
    %101 = vmatpush1.msra.mxu0 %v69
    %102 = vmatprep.subr.mxu0 0.0
    %103 = vmatpush1.msra.mxu0 %v70
    %104 = vmatprep.subr.mxu0 0.0
    %105 = vmatpush1.msra.mxu0 %v71
    %106 = vmatprep.subr.mxu0 0.0
    %107 = vmatpush1.msra.mxu0 %v72
    %108 = vmatprep.subr.mxu0 0.0
    %109 = vmatpush1.msra.mxu0 %v73
    %110 = vmatprep.subr.mxu0 0.0
    %111 = vmatpush1.msra.mxu0 0.0
    %112 = vmatprep.subr.mxu0 0.0
    %113 = vmatpush1.msra.mxu0 0.0
    %114 = vmatprep.subr.mxu0 0.0
    %115 = vmatpush1.msra.mxu0 0.0
    %116 = vmatprep.subr.mxu0 0.0
    %117 = vmatpush1.msra.mxu0 0.0
    %118 = vmatprep.subr.mxu0 0.0
    %119 = vmatpush1.msra.mxu0 0.0
    %120 = vmatprep.subr.mxu0 0.0
    %121 = vmatpush1.msra.mxu0 0.0
    %122 = vmatprep.subr.mxu0 0.0
    %123 = vmatpush1.msra.mxu0 0.0
    %124 = vmatprep.subr.mxu0 0.0
    %125 = vmatpush1.msra.mxu0 0.0
    %126 = vmatprep.subr.mxu0 0.0
    %127 = vmatpush1.msra.mxu0 0.0
    %128 = vmatprep.subr.mxu0 0.0
    %129 = vmatpush1.msra.mxu0 0.0
    %130 = vmatprep.subr.mxu0 0.0
    %131 = vmatpush1.msra.mxu0 0.0
    %132 = vmatprep.subr.mxu0 0.0
    %133 = vmatpush1.msra.mxu0 0.0
    %134 = vmatprep.subr.mxu0 0.0
    %135 = vmatpush1.msra.mxu0 0.0
    %136 = vmatprep.subr.mxu0 0.0
    %137 = vmatpush1.msra.mxu0 0.0
    %138 = vmatprep.subr.mxu0 0.0
    %139 = vmatpush1.msra.mxu0 0.0
    %140 = vmatprep.subr.mxu0 0.0
    %141 = vmatpush1.msra.mxu0 0.0
    %142 = vmatprep.mubr.f32.mxu0 0.0
    %143 = vmatmul.mubr.f32.gmra.mrb[0].mxu0 %v55
    %v144 = vpop.f32.mrb[0].mxu0
    %v145 = vadd.f32 %v77, %v144
    %v146 = vpop.f32.mrb[0].mxu0
    %147 = vdwg.mxu0
    %v148 = vmax.f32 %v145, 0.0
    %s149 = scalar_lea.vmem [#allocation7], 128
    %v150 = vld [vmem:[%s149] sm:$0xff]
    %v151 = vld [vmem:[%s149 + $0x8] sm:$0xff]
    %v152 = vld [vmem:[%s149 + $0x10] sm:$0xff]
    %v153 = vld [vmem:[%s149 + $0x18] sm:$0xff]
    %v154 = vld [vmem:[%s149 + $0x20] sm:$0xff]
    %v155 = vld [vmem:[%s149 + $0x28] sm:$0xff]
    %v156 = vld [vmem:[%s149 + $0x30] sm:$0xff]
    %v157 = vld [vmem:[%s149 + $0x38] sm:$0xff]
    %v158 = vld [vmem:[%s149 + $0x40] sm:$0xff]
    %v159 = vld [vmem:[%s149 + $0x48] sm:$0xff]
    %v160 = vld [vmem:[%s149 + $0x50] sm:$0xff]
    %v161 = vld [vmem:[%s149 + $0x58] sm:$0xff]
    %v162 = vld [vmem:[%s149 + $0x60] sm:$0xff]
    %v163 = vld [vmem:[%s149 + $0x68] sm:$0xff]
    %v164 = vld [vmem:[%s149 + $0x70] sm:$0xff]
    %v165 = vld [vmem:[%s149 + $0x78] sm:$0xff]
    %v166 = vlaneseq
    %v167 = vshrl.u32 %v166, 7
    %v168 = vsub.s32 1, %v167
    %v169 = vrot.slane %v57, %v168
    %170 = vmatprep.subr.mxu0 0.0
    %171 = vmatpush1.msra.mxu0 %v150
    %172 = vmatprep.subr.mxu0 0.0
    %173 = vmatpush1.msra.mxu0 %v151
    %174 = vmatprep.subr.mxu0 0.0
    %175 = vmatpush1.msra.mxu0 %v152
    %176 = vmatprep.subr.mxu0 0.0
    %177 = vmatpush1.msra.mxu0 %v153
    %178 = vmatprep.subr.mxu0 0.0
    %179 = vmatpush1.msra.mxu0 %v154
    %180 = vmatprep.subr.mxu0 0.0
    %181 = vmatpush1.msra.mxu0 %v155
    %182 = vmatprep.subr.mxu0 0.0
    %183 = vmatpush1.msra.mxu0 %v156
    %184 = vmatprep.subr.mxu0 0.0
    %185 = vmatpush1.msra.mxu0 %v157
    %186 = vmatprep.subr.mxu0 0.0
    %187 = vmatpush1.msra.mxu0 %v158
    %188 = vmatprep.subr.mxu0 0.0
    %189 = vmatpush1.msra.mxu0 %v159
    %190 = vmatprep.subr.mxu0 0.0
    %191 = vmatpush1.msra.mxu0 %v160
    %192 = vmatprep.subr.mxu0 0.0
    %193 = vmatpush1.msra.mxu0 %v161
    %194 = vmatprep.subr.mxu0 0.0
    %195 = vmatpush1.msra.mxu0 %v162
    %196 = vmatprep.subr.mxu0 0.0
    %197 = vmatpush1.msra.mxu0 %v163
    %198 = vmatprep.subr.mxu0 0.0
    %199 = vmatpush1.msra.mxu0 %v164
    %200 = vmatprep.subr.mxu0 0.0
    %201 = vmatpush1.msra.mxu0 %v165
    %202 = vmatprep.subr.mxu0 0.0
    %203 = vmatpush1.msra.mxu0 0.0
    %204 = vmatprep.subr.mxu0 0.0
    %205 = vmatpush1.msra.mxu0 0.0
    %206 = vmatprep.subr.mxu0 0.0
    %207 = vmatpush1.msra.mxu0 0.0
    %208 = vmatprep.subr.mxu0 0.0
    %209 = vmatpush1.msra.mxu0 0.0
    %210 = vmatprep.subr.mxu0 0.0
    %211 = vmatpush1.msra.mxu0 0.0
    %212 = vmatprep.subr.mxu0 0.0
    %213 = vmatpush1.msra.mxu0 0.0
    %214 = vmatprep.subr.mxu0 0.0
    %215 = vmatpush1.msra.mxu0 0.0
    %216 = vmatprep.subr.mxu0 0.0
    %217 = vmatpush1.msra.mxu0 0.0
    %218 = vmatprep.subr.mxu0 0.0
    %219 = vmatpush1.msra.mxu0 0.0
    %220 = vmatprep.subr.mxu0 0.0
    %221 = vmatpush1.msra.mxu0 0.0
    %222 = vmatprep.subr.mxu0 0.0
    %223 = vmatpush1.msra.mxu0 0.0
    %224 = vmatprep.subr.mxu0 0.0
    %225 = vmatpush1.msra.mxu0 0.0
    %226 = vmatprep.subr.mxu0 0.0
    %227 = vmatpush1.msra.mxu0 0.0
    %228 = vmatprep.subr.mxu0 0.0
    %229 = vmatpush1.msra.mxu0 0.0
    %230 = vmatprep.subr.mxu0 0.0
    %231 = vmatpush1.msra.mxu0 0.0
    %232 = vmatprep.subr.mxu0 0.0
    %233 = vmatpush1.msra.mxu0 0.0
    %234 = vmatprep.mubr.f32.mxu0 0.0
    %235 = vmatmul.mubr.f32.gmra.mrb[0].mxu0 %v148
    %v236 = vpop.f32.mrb[0].mxu0
    %v237 = vadd.f32 %v169, %v236
    %v238 = vpop.f32.mrb[0].mxu0
    %239 = vdwg.mxu0
    %v240 = vmax.f32 %v237, 0.0
    %s241 = scalar_lea.vmem [#allocation7], 256
    %v242 = vld [vmem:[%s241] sm:$0xff]
    %v243 = vld [vmem:[%s241 + $0x8] sm:$0xff]
    %v244 = vld [vmem:[%s241 + $0x10] sm:$0xff]
    %v245 = vld [vmem:[%s241 + $0x18] sm:$0xff]
    %v246 = vld [vmem:[%s241 + $0x20] sm:$0xff]
    %v247 = vld [vmem:[%s241 + $0x28] sm:$0xff]
    %v248 = vld [vmem:[%s241 + $0x30] sm:$0xff]
    %v249 = vld [vmem:[%s241 + $0x38] sm:$0xff]
    %v250 = vld [vmem:[%s241 + $0x40] sm:$0xff]
    %v251 = vld [vmem:[%s241 + $0x48] sm:$0xff]
    %v252 = vld [vmem:[%s241 + $0x50] sm:$0xff]
    %v253 = vld [vmem:[%s241 + $0x58] sm:$0xff]
    %v254 = vld [vmem:[%s241 + $0x60] sm:$0xff]
    %v255 = vld [vmem:[%s241 + $0x68] sm:$0xff]
    %v256 = vld [vmem:[%s241 + $0x70] sm:$0xff]
    %v257 = vld [vmem:[%s241 + $0x78] sm:$0xff]
    %s258 = scalar_lea.vmem [#allocation7], 384
    %v259 = vld [vmem:[%s258] sm:$0xff]
    %v260 = vld [vmem:[%s258 + $0x8] sm:$0xff]
    %v261 = vld [vmem:[%s258 + $0x10] sm:$0xff]
    %v262 = vld [vmem:[%s258 + $0x18] sm:$0xff]
    %v263 = vld [vmem:[%s258 + $0x20] sm:$0xff]
    %v264 = vld [vmem:[%s258 + $0x28] sm:$0xff]
    %v265 = vld [vmem:[%s258 + $0x30] sm:$0xff]
    %v266 = vld [vmem:[%s258 + $0x38] sm:$0xff]
    %v267 = vld [vmem:[%s258 + $0x40] sm:$0xff]
    %v268 = vld [vmem:[%s258 + $0x48] sm:$0xff]
    %v269 = vld [vmem:[%s258 + $0x50] sm:$0xff]
    %v270 = vld [vmem:[%s258 + $0x58] sm:$0xff]
    %v271 = vld [vmem:[%s258 + $0x60] sm:$0xff]
    %v272 = vld [vmem:[%s258 + $0x68] sm:$0xff]
    %v273 = vld [vmem:[%s258 + $0x70] sm:$0xff]
    %v274 = vld [vmem:[%s258 + $0x78] sm:$0xff]
    %275 = vmatprep.subr.mxu0 0.0
    %276 = vmatpush1.msra.mxu0 %v259
    %277 = vmatprep.subr.mxu0 0.0
    %278 = vmatpush1.msra.mxu0 %v260
    %279 = vmatprep.subr.mxu0 0.0
    %280 = vmatpush1.msra.mxu0 %v261
    %281 = vmatprep.subr.mxu0 0.0
    %282 = vmatpush1.msra.mxu0 %v262
    %283 = vmatprep.subr.mxu0 0.0
    %284 = vmatpush1.msra.mxu0 %v263
    %285 = vmatprep.subr.mxu0 0.0
    %286 = vmatpush1.msra.mxu0 %v264
    %287 = vmatprep.subr.mxu0 0.0
    %288 = vmatpush1.msra.mxu0 %v265
    %289 = vmatprep.subr.mxu0 0.0
    %290 = vmatpush1.msra.mxu0 %v266
    %291 = vmatprep.subr.mxu0 0.0
    %292 = vmatpush1.msra.mxu0 %v267
    %293 = vmatprep.subr.mxu0 0.0
    %294 = vmatpush1.msra.mxu0 %v268
    %295 = vmatprep.subr.mxu0 0.0
    %296 = vmatpush1.msra.mxu0 %v269
    %297 = vmatprep.subr.mxu0 0.0
    %298 = vmatpush1.msra.mxu0 %v270
    %299 = vmatprep.subr.mxu0 0.0
    %300 = vmatpush1.msra.mxu0 %v271
    %301 = vmatprep.subr.mxu0 0.0
    %302 = vmatpush1.msra.mxu0 %v272
    %303 = vmatprep.subr.mxu0 0.0
    %304 = vmatpush1.msra.mxu0 %v273
    %305 = vmatprep.subr.mxu0 0.0
    %306 = vmatpush1.msra.mxu0 %v274
    %307 = vmatprep.subr.mxu0 0.0
    %308 = vmatpush1.msra.mxu0 0.0
    %309 = vmatprep.subr.mxu0 0.0
    %310 = vmatpush1.msra.mxu0 0.0
    %311 = vmatprep.subr.mxu0 0.0
    %312 = vmatpush1.msra.mxu0 0.0
    %313 = vmatprep.subr.mxu0 0.0
    %314 = vmatpush1.msra.mxu0 0.0
    %315 = vmatprep.subr.mxu0 0.0
    %316 = vmatpush1.msra.mxu0 0.0
    %317 = vmatprep.subr.mxu0 0.0
    %318 = vmatpush1.msra.mxu0 0.0
    %319 = vmatprep.subr.mxu0 0.0
    %320 = vmatpush1.msra.mxu0 0.0
    %321 = vmatprep.subr.mxu0 0.0
    %322 = vmatpush1.msra.mxu0 0.0
    %323 = vmatprep.subr.mxu0 0.0
    %324 = vmatpush1.msra.mxu0 0.0
    %325 = vmatprep.subr.mxu0 0.0
    %326 = vmatpush1.msra.mxu0 0.0
    %327 = vmatprep.subr.mxu0 0.0
    %328 = vmatpush1.msra.mxu0 0.0
    %329 = vmatprep.subr.mxu0 0.0
    %330 = vmatpush1.msra.mxu0 0.0
    %331 = vmatprep.subr.mxu0 0.0
    %332 = vmatpush1.msra.mxu0 0.0
    %333 = vmatprep.subr.mxu0 0.0
    %334 = vmatpush1.msra.mxu0 0.0
    %335 = vmatprep.subr.mxu0 0.0
    %336 = vmatpush1.msra.mxu0 0.0
    %337 = vmatprep.subr.mxu0 0.0
    %338 = vmatpush1.msra.mxu0 0.0
    %339 = vmatprep.mubr.f32.mxu0 0.0
    %340 = vmatmul.mubr.f32.gmra.mrb[0].mxu0 %v56
    %v341 = vpop.f32.mrb[0].mxu0
    %v342 = vadd.f32 0.0, %v341
    %v343 = vpop.f32.mrb[0].mxu0
    %344 = vdwg.mxu0
    %345 = vmatprep.subr.mxu0 0.0
    %346 = vmatpush1.msra.mxu0 %v242
    %347 = vmatprep.subr.mxu0 0.0
    %348 = vmatpush1.msra.mxu0 %v243
    %349 = vmatprep.subr.mxu0 0.0
    %350 = vmatpush1.msra.mxu0 %v244
    %351 = vmatprep.subr.mxu0 0.0
    %352 = vmatpush1.msra.mxu0 %v245
    %353 = vmatprep.subr.mxu0 0.0
    %354 = vmatpush1.msra.mxu0 %v246
    %355 = vmatprep.subr.mxu0 0.0
    %356 = vmatpush1.msra.mxu0 %v247
    %357 = vmatprep.subr.mxu0 0.0
    %358 = vmatpush1.msra.mxu0 %v248
    %359 = vmatprep.subr.mxu0 0.0
    %360 = vmatpush1.msra.mxu0 %v249
    %361 = vmatprep.subr.mxu0 0.0
    %362 = vmatpush1.msra.mxu0 %v250
    %363 = vmatprep.subr.mxu0 0.0
    %364 = vmatpush1.msra.mxu0 %v251
    %365 = vmatprep.subr.mxu0 0.0
    %366 = vmatpush1.msra.mxu0 %v252
    %367 = vmatprep.subr.mxu0 0.0
    %368 = vmatpush1.msra.mxu0 %v253
    %369 = vmatprep.subr.mxu0 0.0
    %370 = vmatpush1.msra.mxu0 %v254
    %371 = vmatprep.subr.mxu0 0.0
    %372 = vmatpush1.msra.mxu0 %v255
    %373 = vmatprep.subr.mxu0 0.0
    %374 = vmatpush1.msra.mxu0 %v256
    %375 = vmatprep.subr.mxu0 0.0
    %376 = vmatpush1.msra.mxu0 %v257
    %377 = vmatprep.subr.mxu0 0.0
    %378 = vmatpush1.msra.mxu0 0.0
    %379 = vmatprep.subr.mxu0 0.0
    %380 = vmatpush1.msra.mxu0 0.0
    %381 = vmatprep.subr.mxu0 0.0
    %382 = vmatpush1.msra.mxu0 0.0
    %383 = vmatprep.subr.mxu0 0.0
    %384 = vmatpush1.msra.mxu0 0.0
    %385 = vmatprep.subr.mxu0 0.0
    %386 = vmatpush1.msra.mxu0 0.0
    %387 = vmatprep.subr.mxu0 0.0
    %388 = vmatpush1.msra.mxu0 0.0
    %389 = vmatprep.subr.mxu0 0.0
    %390 = vmatpush1.msra.mxu0 0.0
    %391 = vmatprep.subr.mxu0 0.0
    %392 = vmatpush1.msra.mxu0 0.0
    %393 = vmatprep.subr.mxu0 0.0
    %394 = vmatpush1.msra.mxu0 0.0
    %395 = vmatprep.subr.mxu0 0.0
    %396 = vmatpush1.msra.mxu0 0.0
    %397 = vmatprep.subr.mxu0 0.0
    %398 = vmatpush1.msra.mxu0 0.0
    %399 = vmatprep.subr.mxu0 0.0
    %400 = vmatpush1.msra.mxu0 0.0
    %401 = vmatprep.subr.mxu0 0.0
    %402 = vmatpush1.msra.mxu0 0.0
    %403 = vmatprep.subr.mxu0 0.0
    %404 = vmatpush1.msra.mxu0 0.0
    %405 = vmatprep.subr.mxu0 0.0
    %406 = vmatpush1.msra.mxu0 0.0
    %407 = vmatprep.subr.mxu0 0.0
    %408 = vmatpush1.msra.mxu0 0.0
    %409 = vmatprep.mubr.f32.mxu0 0.0
    %410 = vmatmul.mubr.f32.gmra.mrb[0].mxu0 %v240
    %v411 = vpop.f32.mrb[0].mxu0
    %v412 = vadd.f32 %v342, %v411
    %v413 = vpop.f32.mrb[0].mxu0
    %414 = vdwg.mxu0
    %v415 = vlaneseq
    %v416 = vshrl.u32 %v415, 7
    %v417 = vsub.s32 2, %v416
    %v418 = vrot.slane %v57, %v417
    %v419 = vadd.f32 %v412, %v418
    %v420 = vmax.f32 %v419, 0.0
    %s421 = scalar_lea.vmem [#allocation7], 512
    %v422 = vld [vmem:[%s421] sm:$0xff]
    %v423 = vld [vmem:[%s421 + $0x8] sm:$0xff]
    %v424 = vld [vmem:[%s421 + $0x10] sm:$0xff]
    %v425 = vld [vmem:[%s421 + $0x18] sm:$0xff]
    %v426 = vld [vmem:[%s421 + $0x20] sm:$0xff]
    %v427 = vld [vmem:[%s421 + $0x28] sm:$0xff]
    %v428 = vld [vmem:[%s421 + $0x30] sm:$0xff]
    %v429 = vld [vmem:[%s421 + $0x38] sm:$0xff]
    %v430 = vld [vmem:[%s421 + $0x40] sm:$0xff]
    %v431 = vld [vmem:[%s421 + $0x48] sm:$0xff]
    %v432 = vld [vmem:[%s421 + $0x50] sm:$0xff]
    %v433 = vld [vmem:[%s421 + $0x58] sm:$0xff]
    %v434 = vld [vmem:[%s421 + $0x60] sm:$0xff]
    %v435 = vld [vmem:[%s421 + $0x68] sm:$0xff]
    %v436 = vld [vmem:[%s421 + $0x70] sm:$0xff]
    %v437 = vld [vmem:[%s421 + $0x78] sm:$0xff]
    %v438 = vlaneseq
    %v439 = vshrl.u32 %v438, 7
    %v440 = vsub.s32 3, %v439
    %v441 = vrot.slane %v57, %v440
    %442 = vmatprep.subr.mxu0 0.0
    %443 = vmatpush1.msra.mxu0 %v422
    %444 = vmatprep.subr.mxu0 0.0
    %445 = vmatpush1.msra.mxu0 %v423
    %446 = vmatprep.subr.mxu0 0.0
    %447 = vmatpush1.msra.mxu0 %v424
    %448 = vmatprep.subr.mxu0 0.0
    %449 = vmatpush1.msra.mxu0 %v425
    %450 = vmatprep.subr.mxu0 0.0
    %451 = vmatpush1.msra.mxu0 %v426
    %452 = vmatprep.subr.mxu0 0.0
    %453 = vmatpush1.msra.mxu0 %v427
    %454 = vmatprep.subr.mxu0 0.0
    %455 = vmatpush1.msra.mxu0 %v428
    %456 = vmatprep.subr.mxu0 0.0
    %457 = vmatpush1.msra.mxu0 %v429
    %458 = vmatprep.subr.mxu0 0.0
    %459 = vmatpush1.msra.mxu0 %v430
    %460 = vmatprep.subr.mxu0 0.0
    %461 = vmatpush1.msra.mxu0 %v431
    %462 = vmatprep.subr.mxu0 0.0
    %463 = vmatpush1.msra.mxu0 %v432
    %464 = vmatprep.subr.mxu0 0.0
    %465 = vmatpush1.msra.mxu0 %v433
    %466 = vmatprep.subr.mxu0 0.0
    %467 = vmatpush1.msra.mxu0 %v434
    %468 = vmatprep.subr.mxu0 0.0
    %469 = vmatpush1.msra.mxu0 %v435
    %470 = vmatprep.subr.mxu0 0.0
    %471 = vmatpush1.msra.mxu0 %v436
    %472 = vmatprep.subr.mxu0 0.0
    %473 = vmatpush1.msra.mxu0 %v437
    %474 = vmatprep.subr.mxu0 0.0
    %475 = vmatpush1.msra.mxu0 0.0
    %476 = vmatprep.subr.mxu0 0.0
    %477 = vmatpush1.msra.mxu0 0.0
    %478 = vmatprep.subr.mxu0 0.0
    %479 = vmatpush1.msra.mxu0 0.0
    %480 = vmatprep.subr.mxu0 0.0
    %481 = vmatpush1.msra.mxu0 0.0
    %482 = vmatprep.subr.mxu0 0.0
    %483 = vmatpush1.msra.mxu0 0.0
    %484 = vmatprep.subr.mxu0 0.0
    %485 = vmatpush1.msra.mxu0 0.0
    %486 = vmatprep.subr.mxu0 0.0
    %487 = vmatpush1.msra.mxu0 0.0
    %488 = vmatprep.subr.mxu0 0.0
    %489 = vmatpush1.msra.mxu0 0.0
    %490 = vmatprep.subr.mxu0 0.0
    %491 = vmatpush1.msra.mxu0 0.0
    %492 = vmatprep.subr.mxu0 0.0
    %493 = vmatpush1.msra.mxu0 0.0
    %494 = vmatprep.subr.mxu0 0.0
    %495 = vmatpush1.msra.mxu0 0.0
    %496 = vmatprep.subr.mxu0 0.0
    %497 = vmatpush1.msra.mxu0 0.0
    %498 = vmatprep.subr.mxu0 0.0
    %499 = vmatpush1.msra.mxu0 0.0
    %500 = vmatprep.subr.mxu0 0.0
    %501 = vmatpush1.msra.mxu0 0.0
    %502 = vmatprep.subr.mxu0 0.0
    %503 = vmatpush1.msra.mxu0 0.0
    %504 = vmatprep.subr.mxu0 0.0
    %505 = vmatpush1.msra.mxu0 0.0
    %506 = vmatprep.mubr.f32.mxu0 0.0
    %507 = vmatmul.mubr.f32.gmra.mrb[0].mxu0 %v420
    %v508 = vpop.f32.mrb[0].mxu0
    %v509 = vadd.f32 %v441, %v508
    %v510 = vpop.f32.mrb[0].mxu0
    %511 = vdwg.mxu0
    %v512 = vmax.f32 %v509, 0.0
    %s513 = scalar_lea.vmem [#allocation7], 640
    %v514 = vld [vmem:[%s513] sm:$0xff]
    %v515 = vld [vmem:[%s513 + $0x8] sm:$0xff]
    %v516 = vld [vmem:[%s513 + $0x10] sm:$0xff]
    %v517 = vld [vmem:[%s513 + $0x18] sm:$0xff]
    %v518 = vld [vmem:[%s513 + $0x20] sm:$0xff]
    %v519 = vld [vmem:[%s513 + $0x28] sm:$0xff]
    %v520 = vld [vmem:[%s513 + $0x30] sm:$0xff]
    %v521 = vld [vmem:[%s513 + $0x38] sm:$0xff]
    %v522 = vld [vmem:[%s513 + $0x40] sm:$0xff]
    %v523 = vld [vmem:[%s513 + $0x48] sm:$0xff]
    %v524 = vld [vmem:[%s513 + $0x50] sm:$0xff]
    %v525 = vld [vmem:[%s513 + $0x58] sm:$0xff]
    %v526 = vld [vmem:[%s513 + $0x60] sm:$0xff]
    %v527 = vld [vmem:[%s513 + $0x68] sm:$0xff]
    %v528 = vld [vmem:[%s513 + $0x70] sm:$0xff]
    %v529 = vld [vmem:[%s513 + $0x78] sm:$0xff]
    %v530 = vlaneseq
    %v531 = vshrl.u32 %v530, 7
    %v532 = vsub.s32 4, %v531
    %v533 = vrot.slane %v57, %v532
    %534 = vmatprep.subr.mxu0 0.0
    %535 = vmatpush1.msra.mxu0 %v514
    %536 = vmatprep.subr.mxu0 0.0
    %537 = vmatpush1.msra.mxu0 %v515
    %538 = vmatprep.subr.mxu0 0.0
    %539 = vmatpush1.msra.mxu0 %v516
    %540 = vmatprep.subr.mxu0 0.0
    %541 = vmatpush1.msra.mxu0 %v517
    %542 = vmatprep.subr.mxu0 0.0
    %543 = vmatpush1.msra.mxu0 %v518
    %544 = vmatprep.subr.mxu0 0.0
    %545 = vmatpush1.msra.mxu0 %v519
    %546 = vmatprep.subr.mxu0 0.0
    %547 = vmatpush1.msra.mxu0 %v520
    %548 = vmatprep.subr.mxu0 0.0
    %549 = vmatpush1.msra.mxu0 %v521
    %550 = vmatprep.subr.mxu0 0.0
    %551 = vmatpush1.msra.mxu0 %v522
    %552 = vmatprep.subr.mxu0 0.0
    %553 = vmatpush1.msra.mxu0 %v523
    %554 = vmatprep.subr.mxu0 0.0
    %555 = vmatpush1.msra.mxu0 %v524
    %556 = vmatprep.subr.mxu0 0.0
    %557 = vmatpush1.msra.mxu0 %v525
    %558 = vmatprep.subr.mxu0 0.0
    %559 = vmatpush1.msra.mxu0 %v526
    %560 = vmatprep.subr.mxu0 0.0
    %561 = vmatpush1.msra.mxu0 %v527
    %562 = vmatprep.subr.mxu0 0.0
    %563 = vmatpush1.msra.mxu0 %v528
    %564 = vmatprep.subr.mxu0 0.0
    %565 = vmatpush1.msra.mxu0 %v529
    %566 = vmatprep.subr.mxu0 0.0
    %567 = vmatpush1.msra.mxu0 0.0
    %568 = vmatprep.subr.mxu0 0.0
    %569 = vmatpush1.msra.mxu0 0.0
    %570 = vmatprep.subr.mxu0 0.0
    %571 = vmatpush1.msra.mxu0 0.0
    %572 = vmatprep.subr.mxu0 0.0
    %573 = vmatpush1.msra.mxu0 0.0
    %574 = vmatprep.subr.mxu0 0.0
    %575 = vmatpush1.msra.mxu0 0.0
    %576 = vmatprep.subr.mxu0 0.0
    %577 = vmatpush1.msra.mxu0 0.0
    %578 = vmatprep.subr.mxu0 0.0
    %579 = vmatpush1.msra.mxu0 0.0
    %580 = vmatprep.subr.mxu0 0.0
    %581 = vmatpush1.msra.mxu0 0.0
    %582 = vmatprep.subr.mxu0 0.0
    %583 = vmatpush1.msra.mxu0 0.0
    %584 = vmatprep.subr.mxu0 0.0
    %585 = vmatpush1.msra.mxu0 0.0
    %586 = vmatprep.subr.mxu0 0.0
    %587 = vmatpush1.msra.mxu0 0.0
    %588 = vmatprep.subr.mxu0 0.0
    %589 = vmatpush1.msra.mxu0 0.0
    %590 = vmatprep.subr.mxu0 0.0
    %591 = vmatpush1.msra.mxu0 0.0
    %592 = vmatprep.subr.mxu0 0.0
    %593 = vmatpush1.msra.mxu0 0.0
    %594 = vmatprep.subr.mxu0 0.0
    %595 = vmatpush1.msra.mxu0 0.0
    %596 = vmatprep.subr.mxu0 0.0
    %597 = vmatpush1.msra.mxu0 0.0
    %598 = vmatprep.mubr.f32.mxu0 0.0
    %599 = vmatmul.mubr.f32.gmra.mrb[0].mxu0 %v512
    %v600 = vpop.f32.mrb[0].mxu0
    %v601 = vadd.f32 %v533, %v600
    %v602 = vpop.f32.mrb[0].mxu0
    %603 = vdwg.mxu0
    %604 = vst [vmem:[#allocation8] sm:$0xff] %v601
    // Predicated region
    $region30: #{tpu_custom_call.1} parent=1 // pred_check
      _
    $region31: #{tpu_custom_call.1} parent=1 // pred_check_branch
      %606 = sbr.rel (0) target = $region33
    $region32: #{tpu_custom_call.1} parent=1 // pred_region
      %s608 = ssub.s32 128, 128
      %609 = vsyncadd [#allocation4], %s608
      %s611 = sshll.u32 [#allocation8], 4
      %s612 = int_to_ptr.vmem [resolvable:$true] %s611
      %614 = dma.vmem_to_hbm [thread:$0]  %s612, 128, %s4, [#allocation4]
    $region33: #{tpu_custom_call.1} parent=1 // pred_fallthru
      _
    // Predicated region
    $region34: #{tpu_custom_call.1} parent=1 // pred_check
      _
    $region35: #{tpu_custom_call.1} parent=1 // pred_check_branch
      %616 = sbr.rel (0) target = $region37
    $region36: #{tpu_custom_call.1} parent=1 // pred_region
      %617 = dma.done [#allocation4], 128
    $region37: #{tpu_custom_call.1} parent=1 // pred_fallthru
      _
    %618 = vsyncpa [#allocation3], 1
    %619 = vsyncpa [#allocation6], 1
    %620 = vsyncpa [#allocation4], 1

</llo_original>
